<compile_context>
chip_gen: v7x
topology: tpu7x:2x2x1
jax: 0.10.0
libtpu: 0.0.40
codegen_flags: <defaults>
</compile_context>

<pallas_src>
import math

import jax
import jax.numpy as jnp
from jax import lax
from jax.experimental import pallas as pl
from jax.experimental.pallas import tpu as pltpu


def _round_up(n: int, m: int) -> int:
    return ((n + m - 1) // m) * m


def _make_kernel(tm: int, total_rows: int, need_row_mask: bool):
    def kernel(x_ref, w_ref, o_ref):
        # x_ref: (tm, D) tile of flattened points
        # w_ref: (D, C) bf16, already column-L2-normalized and scaled by s
        # o_ref: (tm, C) f32 output tile
        x = x_ref[...].astype(jnp.float32)

        if need_row_mask:
            # Ragged final tile: zero padded rows so no garbage reaches the
            # norm / MXU (their output rows are dropped by Pallas anyway).
            row = lax.broadcasted_iota(jnp.int32, (tm, 1), 0) + pl.program_id(0) * tm
            x = jnp.where(row < total_rows, x, 0.0)

        # rsqrt + multiply instead of sqrt + max + divide; max(sumsq, 1e-24)
        # preserves torch's clamp(norm, min=1e-12) (all-zero rows -> 0 output).
        sumsq = jnp.sum(x * x, axis=1, keepdims=True)
        xn = (x * lax.rsqrt(jnp.maximum(sumsq, 1e-24))).astype(jnp.bfloat16)

        o_ref[...] = jnp.dot(
            xn, w_ref[...], preferred_element_type=jnp.float32
        ).astype(o_ref.dtype)

    return kernel


def amsoftmax_forward(x, W, s=30.0, *, tm=1024):
    """x: (batch, pts_num, embed_dim), W: (embed_dim, n_classes)."""
    batch, pts_num, embed_dim = x.shape
    n_classes = W.shape[1]
    M = batch * pts_num

    # ---- One-time work hoisted out of the grid loop -------------------------
    # Column-L2-normalize W, fold the scale s in, cast to bf16 (once per call).
    w32 = W.astype(jnp.float32)
    w_sumsq = jnp.sum(w32 * w32, axis=0, keepdims=True)
    wn = (w32 * (lax.rsqrt(jnp.maximum(w_sumsq, 1e-24)) * s)).astype(jnp.bfloat16)

    # Free reshape (contiguous view); no padded copy of the activations.
    x_flat = x.reshape(M, embed_dim)

    # Row tile: large (overhead amortization), 8-aligned, capped for tiny M.
    tm_eff = int(min(tm, _round_up(M, 8)))
    grid = (pl.cdiv(M, tm_eff),)
    need_row_mask = (M % tm_eff) != 0

    # VMEM budget: double-buffered x and out tiles (lane-padded layout) plus
    # the resident bf16 W, with slack.
    d_lanes = _round_up(embed_dim, 128)
    c_lanes = _round_up(n_classes, 128)
    est = (
        2 * tm_eff * d_lanes * 4
        + 2 * tm_eff * c_lanes * 4
        + 2 * _round_up(embed_dim, 16) * c_lanes * 2
        + (2 << 20)
    )
    vmem_limit = int(min(max(est, 16 * 1024 * 1024), 48 * 1024 * 1024))

    out = pl.pallas_call(
        _make_kernel(tm_eff, M, need_row_mask),
        out_shape=jax.ShapeDtypeStruct((M, n_classes), jnp.float32),
        grid=grid,
        in_specs=[
            # tile rows of x; full (unpadded) feature dim per block
            pl.BlockSpec((tm_eff, embed_dim), lambda i: (i, 0)),
            # pre-normalized, pre-scaled W: constant block -> stays resident
            pl.BlockSpec((embed_dim, n_classes), lambda i: (0, 0)),
        ],
        out_specs=pl.BlockSpec((tm_eff, n_classes), lambda i: (i, 0)),
        compiler_params=pltpu.CompilerParams(
            dimension_semantics=("parallel",),
            vmem_limit_bytes=vmem_limit,
        ),
    )(x_flat, wn)

    return out.reshape(batch, pts_num, n_classes)


def amsoftmax_reference(x, W, s=30.0):
    batch, pts_num, embed_dim = x.shape
    xf = x.reshape(batch * pts_num, embed_dim).astype(jnp.float32)
    xn = xf / jnp.maximum(jnp.linalg.norm(xf, axis=1, keepdims=True), 1e-12)
    wn = W / jnp.maximum(jnp.linalg.norm(W, axis=0, keepdims=True), 1e-12)
    return (xn @ wn * s).reshape(batch, pts_num, -1)


if __name__ == "__main__":
    # Small shapes consistent with the module's forward.
    batch, pts_num, embed_dim, n_classes = 2, 64, 32, 16
    s = 30.0

    key = jax.random.PRNGKey(0)
    kx, kw = jax.random.split(key)

    x = jax.random.normal(kx, (batch, pts_num, embed_dim), dtype=jnp.float32)

    # Deterministic Xavier-normal init for W (gain=1), matching
    # nn.init.xavier_normal_(torch.randn(in_feats, n_classes)).
    xavier_std = math.sqrt(2.0 / (embed_dim + n_classes))
    W = jax.random.normal(kw, (embed_dim, n_classes), dtype=jnp.float32) * xavier_std

    out = amsoftmax_forward(x, W, s=s)
    out = jax.block_until_ready(out)

    ref = amsoftmax_reference(x, W, s=s)
    assert out.shape == (batch, pts_num, n_classes)
    # Tolerance accounts for bf16 MXU operands (f32 accumulation).
    assert jnp.allclose(out, ref, atol=3e-1, rtol=3e-2), "mismatch vs reference"

    print("KERNEL_OK")
</pallas_src>

<mosaic_0001>
module attributes {stable_mosaic.version = 11 : i64} {
  func.func @kernel(%arg0: i32, %arg1: memref<128x32xf32, #tpu.memory_space<vmem>>, %arg2: memref<32x16xbf16, #tpu.memory_space<vmem>>, %arg3: memref<128x16xf32, #tpu.memory_space<vmem>>) attributes {dimension_semantics = [#tpu.dimension_semantics<parallel>], iteration_bounds = array<i64: 1>, scalar_prefetch = 0 : i64, scratch_operands = 0 : i64, tpu.core_type = #tpu.core_type<tc>, window_params = [{transform_indices = @transform_0, window_bounds = array<i64: 128, 32>}, {pipeline_mode = #tpu.pipeline_mode<synchronous>, transform_indices = @transform_1, window_bounds = array<i64: 32, 16>}, {transform_indices = @transform_2, window_bounds = array<i64: 128, 16>}]} {
    %c0 = arith.constant 0 : index
    %c0_0 = arith.constant 0 : index
    %0 = vector.load %arg1[%c0, %c0_0] : memref<128x32xf32, #tpu.memory_space<vmem>>, vector<128x32xf32>
    %1 = arith.mulf %0, %0 : vector<128x32xf32>
    %cst = arith.constant dense<0.000000e+00> : vector<128xf32>
    %2 = vector.multi_reduction <add>, %1, %cst [1] : vector<128x32xf32> to vector<128xf32>
    %3 = vector.shape_cast %2 : vector<128xf32> to vector<128x1xf32>
    %cst_1 = arith.constant 1.000000e-24 : f32
    %4 = vector.broadcast %cst_1 : f32 to vector<128x1xf32>
    %5 = arith.maximumf %3, %4 : vector<128x1xf32>
    %6 = math.rsqrt %5 : vector<128x1xf32>
    %7 = vector.broadcast %6 : vector<128x1xf32> to vector<128x32xf32>
    %8 = arith.mulf %0, %7 : vector<128x32xf32>
    %9 = arith.truncf %8 : vector<128x32xf32> to vector<128x32xbf16>
    %c0_2 = arith.constant 0 : index
    %c0_3 = arith.constant 0 : index
    %10 = vector.load %arg2[%c0_2, %c0_3] : memref<32x16xbf16, #tpu.memory_space<vmem>>, vector<32x16xbf16>
    %cst_4 = arith.constant dense<0.000000e+00> : vector<128x16xf32>
    %11 = tpu.matmul %9, %10, %cst_4 {dimension_numbers = #tpu.dot_dimension_numbers<[1], [0], [0], [1], [0, 0, 1, 1], [], []>} : vector<128x32xbf16>, vector<32x16xbf16>, vector<128x16xf32> -> vector<128x16xf32>
    %c0_5 = arith.constant 0 : index
    %c0_6 = arith.constant 0 : index
    %12 = vector.load %arg3[%c0_5, %c0_6] : memref<128x16xf32, #tpu.memory_space<vmem>>, vector<128x16xf32>
    tpu.vector_store %arg3[%c0_5, %c0_6], %11 {strides = array<i32>} : memref<128x16xf32, #tpu.memory_space<vmem>>, vector<128x16xf32>,
    return
  }
  func.func @transform_0(%arg0: i32) -> (i32, i32) {
    %c0_i32 = arith.constant 0 : i32
    %c0_i32_0 = arith.constant 0 : i32
    return %arg0, %c0_i32 : i32, i32
  }
  func.func @transform_1(%arg0: i32) -> (i32, i32) {
    %c0_i32 = arith.constant 0 : i32
    %c0_i32_0 = arith.constant 0 : i32
    %c0_i32_1 = arith.constant 0 : i32
    return %c0_i32, %c0_i32_0 : i32, i32
  }
  func.func @transform_2(%arg0: i32) -> (i32, i32) {
    %c0_i32 = arith.constant 0 : i32
    %c0_i32_0 = arith.constant 0 : i32
    return %arg0, %c0_i32 : i32, i32
  }
}

</mosaic_0001>

<llo_original>
// kernel: tpu_custom_call.1
$region0: #{tpu_custom_call.1}
  #allocation0 [shape = 'u32[]', space=smem, size = 0x4, offset = 0x4, fixed_abs, tag = 'smem constant byte address 0x4 - core index']
  #allocation1 [shape = 'u32[144,128]{1,0:T(1,128)}', space=vmem, size = 0x12000, scoped, tag = 'internal scratch']
  %s0 = inlined_call_operand.vmem [shape: f32[128,32], index: 0, kind: input, shape index: {}]
  %s1 = inlined_call_operand.vmem [shape: bf16[32,16], index: 1, kind: input, shape index: {}]
  %s2 = inlined_call_operand.vmem [shape: f32[128,16], index: 2, kind: output, shape index: {}]
  %s3 = sld [smem:[#allocation0]]
  $region18: #{tpu_custom_call.1} parent=0
    _
  %s5 = ssub.s32 1, %s3
  %s6 = scalar_select 0, %s5, %s3
  // Predicated region
  $region2: #{tpu_custom_call.1} parent=0 // pred_check
    _
  $region3: #{tpu_custom_call.1} parent=0 // pred_check_branch
    %8 = sbr.rel (0) target = $region5
  $region4: #{tpu_custom_call.1} parent=0 // pred_region
    _
  $region5: #{tpu_custom_call.1} parent=0 // pred_fallthru
    _
  // Predicated region
  $region6: #{tpu_custom_call.1} parent=0 // pred_check
    _
  $region7: #{tpu_custom_call.1} parent=0 // pred_check_branch
    %10 = sbr.rel (0) target = $region9
  $region8: #{tpu_custom_call.1} parent=0 // pred_region
    _
  $region9: #{tpu_custom_call.1} parent=0 // pred_fallthru
    _
  %v12 = vld [vmem:[%s0] sm:$0xff]
  %v13 = vld [vmem:[%s0 + $0x8] sm:$0xff]
  %v14 = vld [vmem:[%s0 + $0x10] sm:$0xff]
  %v15 = vld [vmem:[%s0 + $0x18] sm:$0xff]
  %v16 = vld [vmem:[%s0 + $0x20] sm:$0xff]
  %v17 = vld [vmem:[%s0 + $0x28] sm:$0xff]
  %v18 = vld [vmem:[%s0 + $0x30] sm:$0xff]
  %v19 = vld [vmem:[%s0 + $0x38] sm:$0xff]
  %v20 = vld [vmem:[%s0 + $0x40] sm:$0xff]
  %v21 = vld [vmem:[%s0 + $0x48] sm:$0xff]
  %v22 = vld [vmem:[%s0 + $0x50] sm:$0xff]
  %v23 = vld [vmem:[%s0 + $0x58] sm:$0xff]
  %v24 = vld [vmem:[%s0 + $0x60] sm:$0xff]
  %v25 = vld [vmem:[%s0 + $0x68] sm:$0xff]
  %v26 = vld [vmem:[%s0 + $0x70] sm:$0xff]
  %v27 = vld [vmem:[%s0 + $0x78] sm:$0xff]
  %v28 = vmul.f32 %v12, %v12
  %v29 = vmul.f32 %v13, %v13
  %v30 = vmul.f32 %v14, %v14
  %v31 = vmul.f32 %v15, %v15
  %v32 = vmul.f32 %v16, %v16
  %v33 = vmul.f32 %v17, %v17
  %v34 = vmul.f32 %v18, %v18
  %v35 = vmul.f32 %v19, %v19
  %v36 = vmul.f32 %v20, %v20
  %v37 = vmul.f32 %v21, %v21
  %v38 = vmul.f32 %v22, %v22
  %v39 = vmul.f32 %v23, %v23
  %v40 = vmul.f32 %v24, %v24
  %v41 = vmul.f32 %v25, %v25
  %v42 = vmul.f32 %v26, %v26
  %v43 = vmul.f32 %v27, %v27
  %vm44 = vcmask 261120
  %v45 = vsel %vm44, %v28, 0.0
  %46 = vadd.xlane.f32.xlu0 %v45
  %v47 = vpop.xlane.xlu0 %46
  %v48 = vsel %vm44, %v29, 0.0
  %49 = vadd.xlane.f32.xlu0 %v48
  %v50 = vpop.xlane.xlu0 %49
  %v51 = vsel %vm44, %v30, 0.0
  %52 = vadd.xlane.f32.xlu0 %v51
  %v53 = vpop.xlane.xlu0 %52
  %v54 = vsel %vm44, %v31, 0.0
  %55 = vadd.xlane.f32.xlu0 %v54
  %v56 = vpop.xlane.xlu0 %55
  %v57 = vsel %vm44, %v32, 0.0
  %58 = vadd.xlane.f32.xlu0 %v57
  %v59 = vpop.xlane.xlu0 %58
  %v60 = vsel %vm44, %v33, 0.0
  %61 = vadd.xlane.f32.xlu0 %v60
  %v62 = vpop.xlane.xlu0 %61
  %v63 = vsel %vm44, %v34, 0.0
  %64 = vadd.xlane.f32.xlu0 %v63
  %v65 = vpop.xlane.xlu0 %64
  %v66 = vsel %vm44, %v35, 0.0
  %67 = vadd.xlane.f32.xlu0 %v66
  %v68 = vpop.xlane.xlu0 %67
  %v69 = vsel %vm44, %v36, 0.0
  %70 = vadd.xlane.f32.xlu0 %v69
  %v71 = vpop.xlane.xlu0 %70
  %v72 = vsel %vm44, %v37, 0.0
  %73 = vadd.xlane.f32.xlu0 %v72
  %v74 = vpop.xlane.xlu0 %73
  %v75 = vsel %vm44, %v38, 0.0
  %76 = vadd.xlane.f32.xlu0 %v75
  %v77 = vpop.xlane.xlu0 %76
  %v78 = vsel %vm44, %v39, 0.0
  %79 = vadd.xlane.f32.xlu0 %v78
  %v80 = vpop.xlane.xlu0 %79
  %v81 = vsel %vm44, %v40, 0.0
  %82 = vadd.xlane.f32.xlu0 %v81
  %v83 = vpop.xlane.xlu0 %82
  %v84 = vsel %vm44, %v41, 0.0
  %85 = vadd.xlane.f32.xlu0 %v84
  %v86 = vpop.xlane.xlu0 %85
  %v87 = vsel %vm44, %v42, 0.0
  %88 = vadd.xlane.f32.xlu0 %v87
  %v89 = vpop.xlane.xlu0 %88
  %v90 = vsel %vm44, %v43, 0.0
  %91 = vadd.xlane.f32.xlu0 %v90
  %v92 = vpop.xlane.xlu0 %91
  %v93 = vmax.f32 %v47, 1e-24
  %v94 = vmax.f32 %v50, 1e-24
  %v95 = vmax.f32 %v53, 1e-24
  %v96 = vmax.f32 %v56, 1e-24
  %v97 = vmax.f32 %v59, 1e-24
  %v98 = vmax.f32 %v62, 1e-24
  %v99 = vmax.f32 %v65, 1e-24
  %v100 = vmax.f32 %v68, 1e-24
  %v101 = vmax.f32 %v71, 1e-24
  %v102 = vmax.f32 %v74, 1e-24
  %v103 = vmax.f32 %v77, 1e-24
  %v104 = vmax.f32 %v80, 1e-24
  %v105 = vmax.f32 %v83, 1e-24
  %v106 = vmax.f32 %v86, 1e-24
  %v107 = vmax.f32 %v89, 1e-24
  %v108 = vmax.f32 %v92, 1e-24
  %v109 = vrsqrt.pop %v93
  %v110 = vrsqrt.pop %v94
  %v111 = vrsqrt.pop %v95
  %v112 = vrsqrt.pop %v96
  %v113 = vrsqrt.pop %v97
  %v114 = vrsqrt.pop %v98
  %v115 = vrsqrt.pop %v99
  %v116 = vrsqrt.pop %v100
  %v117 = vrsqrt.pop %v101
  %v118 = vrsqrt.pop %v102
  %v119 = vrsqrt.pop %v103
  %v120 = vrsqrt.pop %v104
  %v121 = vrsqrt.pop %v105
  %v122 = vrsqrt.pop %v106
  %v123 = vrsqrt.pop %v107
  %v124 = vrsqrt.pop %v108
  %v125 = vmul.f32 %v12, %v109
  %v126 = vmul.f32 %v13, %v110
  %v127 = vmul.f32 %v14, %v111
  %v128 = vmul.f32 %v15, %v112
  %v129 = vmul.f32 %v16, %v113
  %v130 = vmul.f32 %v17, %v114
  %v131 = vmul.f32 %v18, %v115
  %v132 = vmul.f32 %v19, %v116
  %v133 = vmul.f32 %v20, %v117
  %v134 = vmul.f32 %v21, %v118
  %v135 = vmul.f32 %v22, %v119
  %v136 = vmul.f32 %v23, %v120
  %v137 = vmul.f32 %v24, %v121
  %v138 = vmul.f32 %v25, %v122
  %v139 = vmul.f32 %v26, %v123
  %v140 = vmul.f32 %v27, %v124
  %v141 = vpack.c.bf16 %v126, %v125
  %v142 = vpack.c.bf16 %v128, %v127
  %v143 = vpack.c.bf16 %v130, %v129
  %v144 = vpack.c.bf16 %v132, %v131
  %v145 = vpack.c.bf16 %v134, %v133
  %v146 = vpack.c.bf16 %v136, %v135
  %v147 = vpack.c.bf16 %v138, %v137
  %v148 = vpack.c.bf16 %v140, %v139
  %v149 = vld [vmem:[%s1] sm:$0xf]
  %v150 = vld [vmem:[%s1 + $0x4] sm:$0xf]
  %v151 = vld [vmem:[%s1 + $0x8] sm:$0xf]
  %v152 = vld [vmem:[%s1 + $0xc] sm:$0xf]
  %v157 = vunpack.c.l.b16 %v149
  %v158 = vunpack.c.l.b16 %v150
  %v159 = vunpack.c.l.b16 %v151
  %v160 = vunpack.c.l.b16 %v152
  %v161 = vpack.c.b16 %v158, %v157
  %v162 = vpack.c.b16 %v160, %v159
  %v166 = vsel %vm44, %v141, 0
  %v169 = vsel %vm44, %v142, 0
  %v172 = vsel %vm44, %v143, 0
  %v175 = vsel %vm44, %v144, 0
  %v178 = vsel %vm44, %v145, 0
  %v181 = vsel %vm44, %v146, 0
  %v184 = vsel %vm44, %v147, 0
  %v187 = vsel %vm44, %v148, 0
  %189 = vmatprep.subr.bf16.mxu0 0
  %190 = vmatpush1.bf16.msra.mxu0 %v161
  %191 = vmatprep.subr.bf16.mxu0 0
  %192 = vmatpush1.bf16.msra.mxu0 %v162
  %193 = vmatprep.subr.bf16.mxu0 0
  %194 = vmatpush1.bf16.msra.mxu0 0
  %195 = vmatprep.subr.bf16.mxu0 0
  %196 = vmatpush1.bf16.msra.mxu0 0
  %197 = vmatprep.subr.bf16.mxu0 0
  %198 = vmatpush1.bf16.msra.mxu0 0
  %199 = vmatprep.subr.bf16.mxu0 0
  %200 = vmatpush1.bf16.msra.mxu0 0
  %201 = vmatprep.subr.bf16.mxu0 0
  %202 = vmatpush1.bf16.msra.mxu0 0
  %203 = vmatprep.subr.bf16.mxu0 0
  %204 = vmatpush1.bf16.msra.mxu0 0
  %205 = vmatprep.subr.bf16.mxu0 0
  %206 = vmatpush1.bf16.msra.mxu0 0
  %207 = vmatprep.subr.bf16.mxu0 0
  %208 = vmatpush1.bf16.msra.mxu0 0
  %209 = vmatprep.subr.bf16.mxu0 0
  %210 = vmatpush1.bf16.msra.mxu0 0
  %211 = vmatprep.subr.bf16.mxu0 0
  %212 = vmatpush1.bf16.msra.mxu0 0
  %213 = vmatprep.subr.bf16.mxu0 0
  %214 = vmatpush1.bf16.msra.mxu0 0
  %215 = vmatprep.subr.bf16.mxu0 0
  %216 = vmatpush1.bf16.msra.mxu0 0
  %217 = vmatprep.subr.bf16.mxu0 0
  %218 = vmatpush1.bf16.msra.mxu0 0
  %219 = vmatprep.subr.bf16.mxu0 0
  %220 = vmatpush1.bf16.msra.mxu0 0
  %221 = vmatprep.mubr.bf16.mxu0 0
  %222 = vmatmul.mubr.bf16.gmra.mrb[0].mxu0 %v166
  %v223 = vpop.f32.mrb[0].mxu0
  %v224 = vadd.f32 0.0, %v223
  %v225 = vpop.f32.mrb[0].mxu0
  %v226 = vpop.f32.mrb[0].mxu0
  %v227 = vadd.f32 0.0, %v226
  %v228 = vpop.f32.mrb[0].mxu0
  %229 = vmatprep.mubr.bf16.mxu0 0
  %230 = vmatmul.mubr.bf16.gmra.mrb[0].mxu0 %v169
  %v231 = vpop.f32.mrb[0].mxu0
  %v232 = vadd.f32 0.0, %v231
  %v233 = vpop.f32.mrb[0].mxu0
  %v234 = vpop.f32.mrb[0].mxu0
  %v235 = vadd.f32 0.0, %v234
  %v236 = vpop.f32.mrb[0].mxu0
  %237 = vmatprep.mubr.bf16.mxu0 0
  %238 = vmatmul.mubr.bf16.gmra.mrb[0].mxu0 %v172
  %v239 = vpop.f32.mrb[0].mxu0
  %v240 = vadd.f32 0.0, %v239
  %v241 = vpop.f32.mrb[0].mxu0
  %v242 = vpop.f32.mrb[0].mxu0
  %v243 = vadd.f32 0.0, %v242
  %v244 = vpop.f32.mrb[0].mxu0
  %245 = vmatprep.mubr.bf16.mxu0 0
  %246 = vmatmul.mubr.bf16.gmra.mrb[0].mxu0 %v175
  %v247 = vpop.f32.mrb[0].mxu0
  %v248 = vadd.f32 0.0, %v247
  %v249 = vpop.f32.mrb[0].mxu0
  %v250 = vpop.f32.mrb[0].mxu0
  %v251 = vadd.f32 0.0, %v250
  %v252 = vpop.f32.mrb[0].mxu0
  %253 = vmatprep.mubr.bf16.mxu0 0
  %254 = vmatmul.mubr.bf16.gmra.mrb[0].mxu0 %v178
  %v255 = vpop.f32.mrb[0].mxu0
  %v256 = vadd.f32 0.0, %v255
  %v257 = vpop.f32.mrb[0].mxu0
  %v258 = vpop.f32.mrb[0].mxu0
  %v259 = vadd.f32 0.0, %v258
  %v260 = vpop.f32.mrb[0].mxu0
  %261 = vmatprep.mubr.bf16.mxu0 0
  %262 = vmatmul.mubr.bf16.gmra.mrb[0].mxu0 %v181
  %v263 = vpop.f32.mrb[0].mxu0
  %v264 = vadd.f32 0.0, %v263
  %v265 = vpop.f32.mrb[0].mxu0
  %v266 = vpop.f32.mrb[0].mxu0
  %v267 = vadd.f32 0.0, %v266
  %v268 = vpop.f32.mrb[0].mxu0
  %269 = vmatprep.mubr.bf16.mxu0 0
  %270 = vmatmul.mubr.bf16.gmra.mrb[0].mxu0 %v184
  %v271 = vpop.f32.mrb[0].mxu0
  %v272 = vadd.f32 0.0, %v271
  %v273 = vpop.f32.mrb[0].mxu0
  %v274 = vpop.f32.mrb[0].mxu0
  %v275 = vadd.f32 0.0, %v274
  %v276 = vpop.f32.mrb[0].mxu0
  %277 = vmatprep.mubr.bf16.mxu0 0
  %278 = vmatmul.mubr.bf16.gmra.mrb[0].mxu0 %v187
  %v279 = vpop.f32.mrb[0].mxu0
  %v280 = vadd.f32 0.0, %v279
  %v281 = vpop.f32.mrb[0].mxu0
  %v282 = vpop.f32.mrb[0].mxu0
  %v283 = vadd.f32 0.0, %v282
  %v284 = vpop.f32.mrb[0].mxu0
  %285 = vdwg.mxu0
  %vm286 = vcmask 130048
  %287 = vst.msk [vmem:[%s2] sm:$0xff] %vm286, %v224
  %288 = vst.msk [vmem:[%s2 + $0x8] sm:$0xff] %vm286, %v227
  %289 = vst.msk [vmem:[%s2 + $0x10] sm:$0xff] %vm286, %v232
  %290 = vst.msk [vmem:[%s2 + $0x18] sm:$0xff] %vm286, %v235
  %291 = vst.msk [vmem:[%s2 + $0x20] sm:$0xff] %vm286, %v240
  %292 = vst.msk [vmem:[%s2 + $0x28] sm:$0xff] %vm286, %v243
  %293 = vst.msk [vmem:[%s2 + $0x30] sm:$0xff] %vm286, %v248
  %294 = vst.msk [vmem:[%s2 + $0x38] sm:$0xff] %vm286, %v251
  %295 = vst.msk [vmem:[%s2 + $0x40] sm:$0xff] %vm286, %v256
  %296 = vst.msk [vmem:[%s2 + $0x48] sm:$0xff] %vm286, %v259
  %297 = vst.msk [vmem:[%s2 + $0x50] sm:$0xff] %vm286, %v264
  %298 = vst.msk [vmem:[%s2 + $0x58] sm:$0xff] %vm286, %v267
  %299 = vst.msk [vmem:[%s2 + $0x60] sm:$0xff] %vm286, %v272
  %300 = vst.msk [vmem:[%s2 + $0x68] sm:$0xff] %vm286, %v275
  %301 = vst.msk [vmem:[%s2 + $0x70] sm:$0xff] %vm286, %v280
  %302 = vst.msk [vmem:[%s2 + $0x78] sm:$0xff] %vm286, %v283
  // Predicated region
  $region10: #{tpu_custom_call.1} parent=0 // pred_check
    _
  $region11: #{tpu_custom_call.1} parent=0 // pred_check_branch
    %304 = sbr.rel (0) target = $region13
  $region12: #{tpu_custom_call.1} parent=0 // pred_region
    _
  $region13: #{tpu_custom_call.1} parent=0 // pred_fallthru
    _
  // Predicated region
  $region14: #{tpu_custom_call.1} parent=0 // pred_check
    _
  $region15: #{tpu_custom_call.1} parent=0 // pred_check_branch
    %306 = sbr.rel (0) target = $region17
  $region16: #{tpu_custom_call.1} parent=0 // pred_region
    _
  $region17: #{tpu_custom_call.1} parent=0 // pred_fallthru
    _

</llo_original>
